<compile_context>
chip_gen: v7x
topology: tpu7x:2x2x1
jax: 0.10.0
libtpu: 0.0.40
codegen_flags: <defaults>
</compile_context>

<pallas_src>
import jax
import jax.numpy as jnp
from jax.experimental import pallas as pl
from jax.experimental.pallas import tpu as pltpu


def _round_up(x, m):
    return ((x + m - 1) // m) * m


def _device_kind():
    try:
        return jax.devices()[0].device_kind.lower()
    except Exception:  # pragma: no cover - defensive only
        return ""


def _choose_tile(dim, pref, align):
    """Pick a tile and the padded dim.  Returns (tile, padded_dim)."""
    if dim <= pref:
        return dim, dim                      # full-dim block: always legal
    for t in (pref, pref // 2, pref // 4):   # prefer a divisor (no padding)
        if t >= align and t % align == 0 and dim % t == 0:
            return t, dim
    t = _round_up(max(pref, align), align)   # pad up to a tile multiple
    return t, _round_up(dim, t)


def _make_kernel(bb, k_total, compute_dtype, acc_dtype):
    """Kernel body; bb / k_total / dtypes are static Python values."""

    def kernel(scalars_ref, x_ref, y_ref, rs_ref, cs_ref, o_ref, acc_ref):
        k_idx = pl.program_id(3)
        nk = pl.num_programs(3)

        @pl.when(k_idx == 0)
        def _init():
            acc_ref[...] = jnp.zeros_like(acc_ref)

        # Pure narrow-dtype MXU feed (zero-point correction deferred to the
        # epilogue); bb is a small static Python int.
        for b in range(bb):
            acc_ref[b] += jnp.dot(
                x_ref[b].astype(compute_dtype),
                y_ref[b].astype(compute_dtype),
                preferred_element_type=acc_dtype,
            )

        @pl.when(k_idx == nk - 1)
        def _finalize():
            a_zp = scalars_ref[0]
            b_zp = scalars_ref[1]
            alpha = scalars_ref[2]
            corrected = (
                acc_ref[...].astype(jnp.float32)
                - a_zp * cs_ref[...]
                - b_zp * rs_ref[...]
                + jnp.float32(k_total) * a_zp * b_zp
            )
            o_ref[...] = corrected * alpha

    return kernel


def bmm_s8t_s8n_f32t(x, y, a_zp, b_zp, alpha,
                     tm_pref=512, tn_pref=512, tk_pref=1024):
    """x: [B, M, K] int8, y: [B, K, N] int8 -> [B, M, N] float32."""
    B, M, K = x.shape
    B2, K2, N = y.shape
    assert B == B2 and K == K2
    assert x.dtype == jnp.int8 and y.dtype == jnp.int8

    tm, Mp = _choose_tile(M, tm_pref, 8)
    tn, Np = _choose_tile(N, tn_pref, 128)
    tk, Kp = _choose_tile(K, tk_pref, 128)

    kind = _device_kind()
    # Only known v5/v6 parts take the integer-MXU path; v7x (no int MXU) and
    # any unknown chip safely fall back to bf16 (exact for int8 values).
    int_mxu_chip = ("v5" in kind) or ("v6" in kind)
    int8_friendly = (tm % 8 == 0) and (tk % 32 == 0) and (tn % 128 == 0)
    if int_mxu_chip and int8_friendly:
        compute_dtype, acc_dtype = jnp.int8, jnp.int32     # native int8 MXU
    else:
        compute_dtype, acc_dtype = jnp.bfloat16, jnp.float32

    # Zero-pad ragged dims to tile multiples.  Exact: zero K-padding adds
    # nothing to the raw x@y; padded M/N rows/cols are sliced off below.
    if (Mp, Kp) != (M, K):
        x = jnp.pad(x, ((0, 0), (0, Mp - M), (0, Kp - K)))
    if (Kp, Np) != (K, N):
        y = jnp.pad(y, ((0, 0), (0, Kp - K), (0, Np - N)))

    # Precomputed row/col sums (one fused int8 reduction each), exact in f32.
    rowsum = jnp.sum(x.astype(jnp.int32), axis=2, keepdims=True).astype(jnp.float32)  # [B,Mp,1]
    colsum = jnp.sum(y.astype(jnp.int32), axis=1, keepdims=True).astype(jnp.float32)  # [B,1,Np]

    # Fold several small whole-problem batches into one grid step to amortize
    # per-step overhead, but keep >= 2 parallel grid steps (v7x megacore).
    bb = 1
    whole_mn = (tm == Mp and tn == Np)
    if whole_mn and B > 1:
        per_batch_bytes = 2 * (tm * tk + tk * tn) + 12 * tm * tn
        max_bb = min(16, max(1, B // 2))
        for cand in range(max_bb, 1, -1):
            if B % cand == 0 and cand * per_batch_bytes <= (8 << 20):
                bb = cand
                break

    grid = (B // bb, Mp // tm, Np // tn, Kp // tk)

    scalars = jnp.array([a_zp, b_zp, alpha], dtype=jnp.float32)
    kernel = _make_kernel(bb, K, compute_dtype, acc_dtype)

    grid_spec = pltpu.PrefetchScalarGridSpec(
        num_scalar_prefetch=1,
        grid=grid,
        in_specs=[
            pl.BlockSpec((bb, tm, tk), lambda b, m, n, k, s: (b, m, k)),
            pl.BlockSpec((bb, tk, tn), lambda b, m, n, k, s: (b, k, n)),
            pl.BlockSpec((bb, tm, 1), lambda b, m, n, k, s: (b, m, 0)),
            pl.BlockSpec((bb, 1, tn), lambda b, m, n, k, s: (b, 0, n)),
        ],
        out_specs=pl.BlockSpec((bb, tm, tn), lambda b, m, n, k, s: (b, m, n)),
        scratch_shapes=[
            pltpu.VMEM((bb, tm, tn), acc_dtype),   # raw x@y accumulator
        ],
    )

    # Generation-aware VMEM limit: v5e scoped default is only 16 MiB; v7x has
    # just 64 MiB physical, so cap with headroom for Mosaic internal scratch.
    acc_bytes = jnp.dtype(acc_dtype).itemsize
    vmem_est = bb * (
        2 * tm * tk + 2 * tk * tn        # int8 operands, double-buffered
        + 2 * tm * tn * 4                # f32 output, double-buffered
        + tm * tn * acc_bytes            # accumulator scratch
        + 2 * (tm + tn) * 4              # row/col sum side inputs
    )
    cap = (48 << 20) if ("v7" in kind) else (100 << 20)
    vmem_limit = int(min(cap, max(32 << 20, 2 * vmem_est)))

    cost = pl.CostEstimate(
        flops=2 * B * Mp * Np * Kp,
        transcendentals=0,
        bytes_accessed=int(x.size) + int(y.size) + 4 * B * Mp * Np,
    )

    out = pl.pallas_call(
        kernel,
        out_shape=jax.ShapeDtypeStruct((B, Mp, Np), jnp.float32),
        grid_spec=grid_spec,
        compiler_params=pltpu.CompilerParams(
            dimension_semantics=("parallel", "parallel", "parallel", "arbitrary"),
            vmem_limit_bytes=vmem_limit,
        ),
        cost_estimate=cost,
    )(scalars, x, y, rowsum, colsum)

    if (Mp, Np) != (M, N):
        out = out[:, :M, :N]
    return out


if __name__ == "__main__":
    # Deterministic module "parameters" (from_a_and_b semantics).
    a_scale, b_scale = 0.05, 0.02
    a_zp, b_zp = 3.0, -2.0
    alpha = a_scale * b_scale

    def reference(xa, yb):
        return (
            jnp.matmul(
                xa.astype(jnp.float32) - jnp.float32(a_zp),
                yb.astype(jnp.float32) - jnp.float32(b_zp),
            )
            * jnp.float32(alpha)
        )

    key = jax.random.PRNGKey(0)
    k1, k2, k3, k4 = jax.random.split(key, 4)

    # Case 1: tiny shapes typical of unit use (single-tile, batch-fold path).
    B, M, K, N = 2, 8, 32, 16
    x = jax.random.randint(k1, (B, M, K), -128, 128, dtype=jnp.int32).astype(jnp.int8)
    y = jax.random.randint(k2, (B, K, N), -128, 128, dtype=jnp.int32).astype(jnp.int8)
    out = jax.block_until_ready(bmm_s8t_s8n_f32t(x, y, a_zp, b_zp, alpha))
    assert out.shape == (B, M, N) and out.dtype == jnp.float32
    assert jnp.allclose(out, reference(x, y), rtol=1e-4, atol=1e-4)

    # Case 2: ragged shape exercising tiling, K-step accumulation and padding
    # (small explicit tiles keep the test fast while covering the tiled path).
    B2, M2, K2, N2 = 2, 200, 384, 320
    x2 = jax.random.randint(k3, (B2, M2, K2), -128, 128, dtype=jnp.int32).astype(jnp.int8)
    y2 = jax.random.randint(k4, (B2, K2, N2), -128, 128, dtype=jnp.int32).astype(jnp.int8)
    out2 = jax.block_until_ready(
        bmm_s8t_s8n_f32t(x2, y2, a_zp, b_zp, alpha,
                         tm_pref=128, tn_pref=128, tk_pref=128)
    )
    assert out2.shape == (B2, M2, N2) and out2.dtype == jnp.float32
    assert jnp.allclose(out2, reference(x2, y2), rtol=1e-4, atol=1e-3)

    print("KERNEL_OK")
</pallas_src>

<mosaic_0001>
module attributes {stable_mosaic.version = 11 : i64} {
  func.func @kernel(%arg0: i32, %arg1: i32, %arg2: i32, %arg3: i32, %arg4: memref<3xf32, #tpu.memory_space<smem>>, %arg5: memref<1x8x32xi8, #tpu.memory_space<vmem>>, %arg6: memref<1x32x16xi8, #tpu.memory_space<vmem>>, %arg7: memref<1x8x1xf32, #tpu.memory_space<vmem>>, %arg8: memref<1x1x16xf32, #tpu.memory_space<vmem>>, %arg9: memref<1x8x16xf32, #tpu.memory_space<vmem>>, %arg10: memref<1x8x16xf32, #tpu.memory_space<vmem>>) attributes {dimension_semantics = [#tpu.dimension_semantics<parallel>, #tpu.dimension_semantics<parallel>, #tpu.dimension_semantics<parallel>, #tpu.dimension_semantics<arbitrary>], iteration_bounds = array<i64: 2, 1, 1, 1>, scalar_prefetch = 1 : i64, scratch_operands = 1 : i64, tpu.core_type = #tpu.core_type<tc>, window_params = [{transform_indices = @transform_0, window_bounds = array<i64: 1, 8, 32>}, {transform_indices = @transform_1, window_bounds = array<i64: 1, 32, 16>}, {transform_indices = @transform_2, window_bounds = array<i64: 1, 8, 1>}, {transform_indices = @transform_3, window_bounds = array<i64: 1, 1, 16>}, {transform_indices = @transform_4, window_bounds = array<i64: 1, 8, 16>}]} {
    %c0_i32 = arith.constant 0 : i32
    %0 = arith.cmpi eq, %arg3, %c0_i32 : i32
    %1 = arith.extui %0 : i1 to i32
    %c0_i32_0 = arith.constant 0 : i32
    %2 = arith.cmpi ne, %1, %c0_i32_0 : i32
    scf.if %2 {
      %cst_14 = arith.constant 0.000000e+00 : f32
      %19 = vector.broadcast %cst_14 : f32 to vector<1x8x16xf32>
      %c0_15 = arith.constant 0 : index
      %c0_16 = arith.constant 0 : index
      %c0_17 = arith.constant 0 : index
      %20 = vector.load %arg10[%c0_15, %c0_16, %c0_17] : memref<1x8x16xf32, #tpu.memory_space<vmem>>, vector<1x8x16xf32>
      tpu.vector_store %arg10[%c0_15, %c0_16, %c0_17], %19 {strides = array<i32>} : memref<1x8x16xf32, #tpu.memory_space<vmem>>, vector<1x8x16xf32>,
    } else {
    }
    %c0 = arith.constant 0 : index
    %c0_1 = arith.constant 0 : index
    %c0_2 = arith.constant 0 : index
    %3 = vector.load %arg10[%c0, %c0_1, %c0_2] : memref<1x8x16xf32, #tpu.memory_space<vmem>>, vector<1x8x16xf32>
    %4 = vector.shape_cast %3 : vector<1x8x16xf32> to vector<8x16xf32>
    %c0_3 = arith.constant 0 : index
    %c0_4 = arith.constant 0 : index
    %c0_5 = arith.constant 0 : index
    %5 = vector.load %arg5[%c0_3, %c0_4, %c0_5] : memref<1x8x32xi8, #tpu.memory_space<vmem>>, vector<1x8x32xi8>
    %6 = vector.shape_cast %5 : vector<1x8x32xi8> to vector<8x32xi8>
    %7 = arith.sitofp %6 : vector<8x32xi8> to vector<8x32xbf16>
    %c0_6 = arith.constant 0 : index
    %c0_7 = arith.constant 0 : index
    %c0_8 = arith.constant 0 : index
    %8 = vector.load %arg6[%c0_6, %c0_7, %c0_8] : memref<1x32x16xi8, #tpu.memory_space<vmem>>, vector<1x32x16xi8>
    %9 = vector.shape_cast %8 : vector<1x32x16xi8> to vector<32x16xi8>
    %10 = arith.sitofp %9 : vector<32x16xi8> to vector<32x16xbf16>
    %cst = arith.constant dense<0.000000e+00> : vector<8x16xf32>
    %11 = tpu.matmul %7, %10, %cst {dimension_numbers = #tpu.dot_dimension_numbers<[1], [0], [0], [1], [0, 0, 1, 1], [], []>} : vector<8x32xbf16>, vector<32x16xbf16>, vector<8x16xf32> -> vector<8x16xf32>
    %12 = arith.addf %4, %11 : vector<8x16xf32>
    %c0_9 = arith.constant 0 : index
    %c0_10 = arith.constant 0 : index
    %c0_11 = arith.constant 0 : index
    %13 = vector.load %arg10[%c0_9, %c0_10, %c0_11] : memref<1x8x16xf32, #tpu.memory_space<vmem>>, vector<1x8x16xf32>
    %14 = vector.shape_cast %13 : vector<1x8x16xf32> to vector<8x16xf32>
    %15 = vector.shape_cast %12 : vector<8x16xf32> to vector<1x8x16xf32>
    tpu.vector_store %arg10[%c0_9, %c0_10, %c0_11], %15 {strides = array<i32>} : memref<1x8x16xf32, #tpu.memory_space<vmem>>, vector<1x8x16xf32>,
    %c0_i32_12 = arith.constant 0 : i32
    %16 = arith.cmpi eq, %arg3, %c0_i32_12 : i32
    %17 = arith.extui %16 : i1 to i32
    %c0_i32_13 = arith.constant 0 : i32
    %18 = arith.cmpi ne, %17, %c0_i32_13 : i32
    scf.if %18 {
      %c0_14 = arith.constant 0 : index
      %19 = memref.load %arg4[%c0_14] : memref<3xf32, #tpu.memory_space<smem>>
      %c1 = arith.constant 1 : index
      %20 = memref.load %arg4[%c1] : memref<3xf32, #tpu.memory_space<smem>>
      %c2 = arith.constant 2 : index
      %21 = memref.load %arg4[%c2] : memref<3xf32, #tpu.memory_space<smem>>
      %c0_15 = arith.constant 0 : index
      %c0_16 = arith.constant 0 : index
      %c0_17 = arith.constant 0 : index
      %22 = vector.load %arg10[%c0_15, %c0_16, %c0_17] : memref<1x8x16xf32, #tpu.memory_space<vmem>>, vector<1x8x16xf32>
      %c0_18 = arith.constant 0 : index
      %c0_19 = arith.constant 0 : index
      %c0_20 = arith.constant 0 : index
      %23 = vector.load %arg8[%c0_18, %c0_19, %c0_20] : memref<1x1x16xf32, #tpu.memory_space<vmem>>, vector<1x1x16xf32>
      %24 = vector.broadcast %19 : f32 to vector<1x1x16xf32>
      %25 = arith.mulf %24, %23 : vector<1x1x16xf32>
      %26 = vector.broadcast %25 : vector<1x1x16xf32> to vector<1x8x16xf32>
      %27 = arith.subf %22, %26 : vector<1x8x16xf32>
      %c0_21 = arith.constant 0 : index
      %c0_22 = arith.constant 0 : index
      %c0_23 = arith.constant 0 : index
      %28 = vector.load %arg7[%c0_21, %c0_22, %c0_23] : memref<1x8x1xf32, #tpu.memory_space<vmem>>, vector<1x8x1xf32>
      %29 = vector.broadcast %20 : f32 to vector<1x8x1xf32>
      %30 = arith.mulf %29, %28 : vector<1x8x1xf32>
      %31 = vector.broadcast %30 : vector<1x8x1xf32> to vector<1x8x16xf32>
      %32 = arith.subf %27, %31 : vector<1x8x16xf32>
      %cst_24 = arith.constant 3.200000e+01 : f32
      %33 = arith.mulf %cst_24, %19 : f32
      %34 = arith.mulf %33, %20 : f32
      %35 = vector.broadcast %34 : f32 to vector<1x8x16xf32>
      %36 = arith.addf %32, %35 : vector<1x8x16xf32>
      %37 = vector.broadcast %21 : f32 to vector<1x8x16xf32>
      %38 = arith.mulf %36, %37 : vector<1x8x16xf32>
      %c0_25 = arith.constant 0 : index
      %c0_26 = arith.constant 0 : index
      %c0_27 = arith.constant 0 : index
      %39 = vector.load %arg9[%c0_25, %c0_26, %c0_27] : memref<1x8x16xf32, #tpu.memory_space<vmem>>, vector<1x8x16xf32>
      tpu.vector_store %arg9[%c0_25, %c0_26, %c0_27], %38 {strides = array<i32>} : memref<1x8x16xf32, #tpu.memory_space<vmem>>, vector<1x8x16xf32>,
    } else {
    }
    return
  }
  func.func @transform_0(%arg0: i32, %arg1: i32, %arg2: i32, %arg3: i32, %arg4: memref<3xf32, #tpu.memory_space<smem>>) -> (i32, i32, i32) {
    %c0_i32 = arith.constant 0 : i32
    return %arg0, %arg1, %arg3 : i32, i32, i32
  }
  func.func @transform_1(%arg0: i32, %arg1: i32, %arg2: i32, %arg3: i32, %arg4: memref<3xf32, #tpu.memory_space<smem>>) -> (i32, i32, i32) {
    %c0_i32 = arith.constant 0 : i32
    return %arg0, %arg3, %arg2 : i32, i32, i32
  }
  func.func @transform_2(%arg0: i32, %arg1: i32, %arg2: i32, %arg3: i32, %arg4: memref<3xf32, #tpu.memory_space<smem>>) -> (i32, i32, i32) {
    %c0_i32 = arith.constant 0 : i32
    %c0_i32_0 = arith.constant 0 : i32
    return %arg0, %arg1, %c0_i32 : i32, i32, i32
  }
  func.func @transform_3(%arg0: i32, %arg1: i32, %arg2: i32, %arg3: i32, %arg4: memref<3xf32, #tpu.memory_space<smem>>) -> (i32, i32, i32) {
    %c0_i32 = arith.constant 0 : i32
    %c0_i32_0 = arith.constant 0 : i32
    return %arg0, %c0_i32, %arg2 : i32, i32, i32
  }
  func.func @transform_4(%arg0: i32, %arg1: i32, %arg2: i32, %arg3: i32, %arg4: memref<3xf32, #tpu.memory_space<smem>>) -> (i32, i32, i32) {
    %c0_i32 = arith.constant 0 : i32
    return %arg0, %arg1, %arg2 : i32, i32, i32
  }
}

</mosaic_0001>

<llo_original>
// kernel: tpu_custom_call.1
$region0: #{tpu_custom_call.1}
  #allocation0 [shape = 'u32[]', space=smem, size = 0x4, offset = 0x4, fixed_abs, tag = 'smem constant byte address 0x4 - core index']
  #allocation1 [shape = 'u32[144,128]{1,0:T(1,128)}', space=vmem, size = 0x12000, scoped, tag = 'internal scratch']
  #allocation2 [shape = 'f32[1,8,16]{2,1,0:T(8,128)}', space=vmem, size = 0x1000, scoped, tag = 'scratch operand']
  #allocation3 [shape = 's32[1]{0}', space=sflag, size = 0x4, scoped, tag = 'scoped memory for tpu_custom_call.1']
  #allocation4 [shape = 'u8[512]{0}', space=smem, size = 0x200, scoped, tag = 'prefetched SMEM operand 0']
  %s0 = inlined_call_operand.vmem [shape: f32[3], index: 0, kind: input, shape index: {}]
  %s1 = inlined_call_operand.vmem [shape: s8[2,8,32], index: 1, kind: input, shape index: {}]
  %s2 = inlined_call_operand.vmem [shape: s8[2,32,16], index: 2, kind: input, shape index: {}]
  %s3 = inlined_call_operand.vmem [shape: f32[2,8,1], index: 3, kind: input, shape index: {}]
  %s4 = inlined_call_operand.vmem [shape: f32[2,1,16], index: 4, kind: input, shape index: {}]
  %s5 = inlined_call_operand.hbm [shape: f32[2,8,16], index: 5, kind: output, shape index: {}]
  %s6 = sld [smem:[#allocation0]]
  $region57: #{tpu_custom_call.1} parent=0
    _
  %s8 = ssub.s32 1, %s6
  %s9 = scalar_select 0, %s8, %s6
  %s10 = sshll.u32 %s0, 4
  %s11 = int_to_ptr.vmem [resolvable:$true] %s10
  %13 = dma.vmem_to_smem %s11, 16, [#allocation4], [#allocation3]
  %14 = dma.done [#allocation3], 16
  %15 = sfence
  $region1: #{tpu_custom_call.1} parent=0
    #allocation5 [shape = 'u8[8192]{0}', space=vmem, size = 0x2000, scoped, tag = 'output window, operand 0']
    #allocation6 [shape = 's32[2]{0}', space=sflag, size = 0x8, scoped, tag = 'scoped memory for tpu_custom_call.1']
    %16 = vsyncpa [#allocation6], 0
    %s17 = scalar_lea.sflag [#allocation6], 1
    %18 = vsyncpa %s17, 0
    loop: start=0, step=1, limit=4
    $region2: #{tpu_custom_call.1} parent=1 // loop_pre_header
      _
    $region3: #{tpu_custom_call.1} parent=1 // loop_header
      %s20 = sphi 0, %s24
      %p21 = scmp.ge.s32.totalorder %s20, 4
      %s27 = sphi 0, %s53
      %s28 = sphi 0, %s49
      %s29 = sphi 0, %s45
      %s30 = sphi 0, %s41
      %s31 = sphi 0, %s27
      %s32 = sphi 0, %s28
      %s33 = sphi 0, %s29
      %s34 = sphi 0, %s30
      %s35 = sphi 0, %s31
      %s36 = sphi 0, %s32
      %s37 = sphi 0, %s33
      %s38 = sphi 0, %s34
      %s60 = sphi 0, %s62
      %s63 = sphi 0, %s60
      %s64 = sphi 0, %s63
      %s80 = sphi 0, %s64
      %s90 = sphi 0, %s92
      %s93 = sphi 0, %s90
      %s94 = sphi 0, %s93
      %s110 = sphi 0, %s94
      %s118 = sphi 0, %s120
      %s121 = sphi 0, %s118
      %s122 = sphi 0, %s121
      %s138 = sphi 0, %s122
      %s146 = sphi 0, %s148
      %s149 = sphi 0, %s146
      %s150 = sphi 0, %s149
      %s166 = sphi 0, %s150
      %s176 = sphi 0, %s178
      %s179 = sphi 0, %s176
      %s180 = sphi 0, %s179
      %s196 = sphi 0, %s180
    $region4: #{tpu_custom_call.1} parent=1 // loop_header_branch
      %23 = sbr.rel (%p21) target = $region8
    $region5: #{tpu_custom_call.1} parent=1 // loop_body
      %s25 = ssub.s32 %s20, 1
      %s26 = ssub.s32 %s20, 2
      %s39 = sadd.s32 1, %s30
      %p40 = scmp.ge.s32.totalorder %s39, 1
      %s41 = scalar_select %p40, 0, %s39
      %s42 = sadd.s32 1, %s29
      %s43 = scalar_select %p40, %s42, %s29
      %p44 = scmp.ge.s32.totalorder %s43, 1
      %s45 = scalar_select %p44, 0, %s43
      %s46 = sadd.s32 1, %s28
      %s47 = scalar_select %p44, %s46, %s28
      %p48 = scmp.ge.s32.totalorder %s47, 1
      %s49 = scalar_select %p48, 0, %s47
      %s50 = sadd.s32 1, %s27
      %s51 = scalar_select %p48, %s50, %s27
      %p52 = scmp.ge.s32.totalorder %s51, 2
      %s53 = scalar_select %p52, 0, %s51
      %s54 = ssub.s32 %s27, %s53
      %s55 = ssub.s32 %s28, %s49
      %s56 = sor.u32 %s54, %s55
      %s57 = ssub.s32 %s30, %s41
      %s58 = sor.u32 %s56, %s57
      %p59 = scmp.eq.s32.totalorder %s58, 0
      %s61 = sadd.s32 %s60, 1
      %s62 = scalar_select %p59, %s60, %s61
      %p65 = pneg %p59
      %p66 = scmp.eq.s32.totalorder %s20, 1
      %p67 = por %p65, %p66
      %p68 = scmp.ne.s32.totalorder %s60, %s63
      %p69 = scmp.eq.s32.totalorder %s20, 0
      %p70 = por %p68, %p69
      %p71 = scmp.ne.s32.totalorder %s60, %s63
      %p72 = scmp.eq.s32.totalorder %s25, 1
      %p73 = por %p71, %p72
      %p74 = scmp.ne.s32.totalorder %s63, %s64
      %p75 = scmp.eq.s32.totalorder %s25, 0
      %p76 = por %p74, %p75
      %p77 = scmp.ne.s32.totalorder %s63, %s64
      %p78 = scmp.eq.s32.totalorder %s26, 1
      %p79 = por %p77, %p78
      %p81 = scmp.ne.s32.totalorder %s64, %s80
      %p82 = scmp.eq.s32.totalorder %s26, 0
      %p83 = por %p81, %p82
      %s84 = ssub.s32 %s27, %s53
      %s85 = ssub.s32 %s30, %s41
      %s86 = sor.u32 %s84, %s85
      %s87 = ssub.s32 %s29, %s45
      %s88 = sor.u32 %s86, %s87
      %p89 = scmp.eq.s32.totalorder %s88, 0
      %s91 = sadd.s32 %s90, 1
      %s92 = scalar_select %p89, %s90, %s91
      %p95 = pneg %p89
      %p96 = scmp.eq.s32.totalorder %s20, 1
      %p97 = por %p95, %p96
      %p98 = scmp.ne.s32.totalorder %s90, %s93
      %p99 = scmp.eq.s32.totalorder %s20, 0
      %p100 = por %p98, %p99
      %p101 = scmp.ne.s32.totalorder %s90, %s93
      %p102 = scmp.eq.s32.totalorder %s25, 1
      %p103 = por %p101, %p102
      %p104 = scmp.ne.s32.totalorder %s93, %s94
      %p105 = scmp.eq.s32.totalorder %s25, 0
      %p106 = por %p104, %p105
      %p107 = scmp.ne.s32.totalorder %s93, %s94
      %p108 = scmp.eq.s32.totalorder %s26, 1
      %p109 = por %p107, %p108
      %p111 = scmp.ne.s32.totalorder %s94, %s110
      %p112 = scmp.eq.s32.totalorder %s26, 0
      %p113 = por %p111, %p112
      %s114 = ssub.s32 %s27, %s53
      %s115 = ssub.s32 %s28, %s49
      %s116 = sor.u32 %s114, %s115
      %p117 = scmp.eq.s32.totalorder %s116, 0
      %s119 = sadd.s32 %s118, 1
      %s120 = scalar_select %p117, %s118, %s119
      %p123 = pneg %p117
      %p124 = scmp.eq.s32.totalorder %s20, 1
      %p125 = por %p123, %p124
      %p126 = scmp.ne.s32.totalorder %s118, %s121
      %p127 = scmp.eq.s32.totalorder %s20, 0
      %p128 = por %p126, %p127
      %p129 = scmp.ne.s32.totalorder %s118, %s121
      %p130 = scmp.eq.s32.totalorder %s25, 1
      %p131 = por %p129, %p130
      %p132 = scmp.ne.s32.totalorder %s121, %s122
      %p133 = scmp.eq.s32.totalorder %s25, 0
      %p134 = por %p132, %p133
      %p135 = scmp.ne.s32.totalorder %s121, %s122
      %p136 = scmp.eq.s32.totalorder %s26, 1
      %p137 = por %p135, %p136
      %p139 = scmp.ne.s32.totalorder %s122, %s138
      %p140 = scmp.eq.s32.totalorder %s26, 0
      %p141 = por %p139, %p140
      %s142 = ssub.s32 %s27, %s53
      %s143 = ssub.s32 %s29, %s45
      %s144 = sor.u32 %s142, %s143
      %p145 = scmp.eq.s32.totalorder %s144, 0
      %s147 = sadd.s32 %s146, 1
      %s148 = scalar_select %p145, %s146, %s147
      %p151 = pneg %p145
      %p152 = scmp.eq.s32.totalorder %s20, 1
      %p153 = por %p151, %p152
      %p154 = scmp.ne.s32.totalorder %s146, %s149
      %p155 = scmp.eq.s32.totalorder %s20, 0
      %p156 = por %p154, %p155
      %p157 = scmp.ne.s32.totalorder %s146, %s149
      %p158 = scmp.eq.s32.totalorder %s25, 1
      %p159 = por %p157, %p158
      %p160 = scmp.ne.s32.totalorder %s149, %s150
      %p161 = scmp.eq.s32.totalorder %s25, 0
      %p162 = por %p160, %p161
      %p163 = scmp.ne.s32.totalorder %s149, %s150
      %p164 = scmp.eq.s32.totalorder %s26, 1
      %p165 = por %p163, %p164
      %p167 = scmp.ne.s32.totalorder %s150, %s166
      %p168 = scmp.eq.s32.totalorder %s26, 0
      %p169 = por %p167, %p168
      %s170 = ssub.s32 %s27, %s53
      %s171 = ssub.s32 %s28, %s49
      %s172 = sor.u32 %s170, %s171
      %s173 = ssub.s32 %s29, %s45
      %s174 = sor.u32 %s172, %s173
      %p175 = scmp.eq.s32.totalorder %s174, 0
      %s177 = sadd.s32 %s176, 1
      %s178 = scalar_select %p175, %s176, %s177
      %p181 = pneg %p175
      %p182 = scmp.eq.s32.totalorder %s20, 1
      %p183 = por %p181, %p182
      %p184 = scmp.ne.s32.totalorder %s176, %s179
      %p185 = scmp.eq.s32.totalorder %s20, 0
      %p186 = por %p184, %p185
      %p187 = scmp.ne.s32.totalorder %s176, %s179
      %p188 = scmp.eq.s32.totalorder %s25, 1
      %p189 = por %p187, %p188
      %p190 = scmp.ne.s32.totalorder %s179, %s180
      %p191 = scmp.eq.s32.totalorder %s25, 0
      %p192 = por %p190, %p191
      %p193 = scmp.ne.s32.totalorder %s179, %s180
      %p194 = scmp.eq.s32.totalorder %s26, 1
      %p195 = por %p193, %p194
      %p197 = scmp.ne.s32.totalorder %s180, %s196
      %p198 = scmp.eq.s32.totalorder %s26, 0
      %p199 = por %p197, %p198
      %p200 = scmp.le.s32.totalorder 1, %s20
      %p201 = scmp.lt.s32.totalorder %s20, 3
      %p202 = pnand %p200, %p201
      %p203 = pneg %p202
      // Predicated region
      $region9: #{tpu_custom_call.1} parent=5 // pred_check
        _
      $region10: #{tpu_custom_call.1} parent=5 // pred_check_branch
        %205 = sbr.rel (%p202) target = $region12
      $region11: #{tpu_custom_call.1} parent=5 // pred_region
        %s206 = ssub.s32 %s20, 1
      $region12: #{tpu_custom_call.1} parent=5 // pred_fallthru
        _
      %p207 = scmp.lt.s32.totalorder %s20, 2
      // Predicated region
      $region13: #{tpu_custom_call.1} parent=5 // pred_check
        %p208 = pneg %p207
      $region14: #{tpu_custom_call.1} parent=5 // pred_check_branch
        %210 = sbr.rel (%p208) target = $region16
      $region15: #{tpu_custom_call.1} parent=5 // pred_region
        // Predicated region
        $region17: #{tpu_custom_call.1} parent=15 // pred_check
          %p211 = pneg %p70
        $region18: #{tpu_custom_call.1} parent=15 // pred_check_branch
          %213 = sbr.rel (%p211) target = $region20
        $region19: #{tpu_custom_call.1} parent=15 // pred_region
          %p214 = scmp.lt.s32.totalorder %s27, 1
          %s215 = scalar_select %p214, %s27, 1
          %p216 = scmp.lt.s32.totalorder %s28, 0
          %s217 = scalar_select %p216, %s28, 0
          %p218 = scmp.lt.s32.totalorder %s30, 0
          %s219 = scalar_select %p218, %s30, 0
          %s220 = sadd.s32 %s219, %s217
          %s221 = sadd.s32 %s220, %s215
          %s222 = smul.addr %s221, 2
          %s223 = scalar_lea.vmem %s1, %s222
        $region20: #{tpu_custom_call.1} parent=15 // pred_fallthru
          _
        // Predicated region
        $region21: #{tpu_custom_call.1} parent=15 // pred_check
          %p224 = pneg %p100
        $region22: #{tpu_custom_call.1} parent=15 // pred_check_branch
          %226 = sbr.rel (%p224) target = $region24
        $region23: #{tpu_custom_call.1} parent=15 // pred_region
          %p227 = scmp.lt.s32.totalorder %s27, 1
          %s228 = scalar_select %p227, %s27, 1
          %p229 = scmp.lt.s32.totalorder %s30, 0
          %s230 = scalar_select %p229, %s30, 0
          %p231 = scmp.lt.s32.totalorder %s29, 0
          %s232 = scalar_select %p231, %s29, 0
          %s233 = sadd.s32 %s232, %s230
          %s234 = sadd.s32 %s233, %s228
          %s235 = smul.addr %s234, 8
          %s236 = scalar_lea.vmem %s2, %s235
        $region24: #{tpu_custom_call.1} parent=15 // pred_fallthru
          _
        // Predicated region
        $region25: #{tpu_custom_call.1} parent=15 // pred_check
          %p237 = pneg %p128
        $region26: #{tpu_custom_call.1} parent=15 // pred_check_branch
          %239 = sbr.rel (%p237) target = $region28
        $region27: #{tpu_custom_call.1} parent=15 // pred_region
          %p240 = scmp.lt.s32.totalorder %s27, 1
          %s241 = scalar_select %p240, %s27, 1
          %p242 = scmp.lt.s32.totalorder %s28, 0
          %s243 = scalar_select %p242, %s28, 0
          %s244 = sadd.s32 %s243, %s241
          %s245 = smul.addr %s244, 8
          %s246 = scalar_lea.vmem %s3, %s245
        $region28: #{tpu_custom_call.1} parent=15 // pred_fallthru
          _
        // Predicated region
        $region29: #{tpu_custom_call.1} parent=15 // pred_check
          %p247 = pneg %p156
        $region30: #{tpu_custom_call.1} parent=15 // pred_check_branch
          %249 = sbr.rel (%p247) target = $region32
        $region31: #{tpu_custom_call.1} parent=15 // pred_region
          %p250 = scmp.lt.s32.totalorder %s27, 1
          %s251 = scalar_select %p250, %s27, 1
          %p252 = scmp.lt.s32.totalorder %s29, 0
          %s253 = scalar_select %p252, %s29, 0
          %s254 = sadd.s32 %s253, %s251
          %s255 = scalar_lea.vmem %s4, %s254
        $region32: #{tpu_custom_call.1} parent=15 // pred_fallthru
          _
      $region16: #{tpu_custom_call.1} parent=5 // pred_fallthru
        _
      %p256 = scmp.le.s32.totalorder 1, %s20
      %p257 = scmp.lt.s32.totalorder %s20, 3
      %p258 = pnand %p256, %p257
      %p259 = pneg %p258
      // Predicated region
      $region33: #{tpu_custom_call.1} parent=5 // pred_check
        _
      $region34: #{tpu_custom_call.1} parent=5 // pred_check_branch
        %261 = sbr.rel (%p258) target = $region36
      $region35: #{tpu_custom_call.1} parent=5 // pred_region
        %s262 = ssub.s32 %s20, 1
        %p263 = scmp.lt.s32.totalorder %s31, 1
        %s264 = scalar_select %p263, %s31, 1
        %p265 = scmp.lt.s32.totalorder %s32, 0
        %s266 = scalar_select %p265, %s32, 0
        %p267 = scmp.lt.s32.totalorder %s34, 0
        %s268 = scalar_select %p267, %s34, 0
        %s269 = sadd.s32 %s268, %s266
        %s270 = sadd.s32 %s269, %s264
        %s271 = smul.addr %s270, 2
        %s272 = scalar_lea.vmem %s1, %s271
        %p273 = pneg %p76
        %p274 = pneg %p73
        %p275 = scmp.lt.s32.totalorder %s31, 1
        %s276 = scalar_select %p275, %s31, 1
        %p277 = scmp.lt.s32.totalorder %s34, 0
        %s278 = scalar_select %p277, %s34, 0
        %p279 = scmp.lt.s32.totalorder %s33, 0
        %s280 = scalar_select %p279, %s33, 0
        %s281 = sadd.s32 %s280, %s278
        %s282 = sadd.s32 %s281, %s276
        %s283 = smul.addr %s282, 8
        %s284 = scalar_lea.vmem %s2, %s283
        %p285 = pneg %p106
        %p286 = pneg %p103
        %p287 = scmp.lt.s32.totalorder %s31, 1
        %s288 = scalar_select %p287, %s31, 1
        %p289 = scmp.lt.s32.totalorder %s32, 0
        %s290 = scalar_select %p289, %s32, 0
        %s291 = sadd.s32 %s290, %s288
        %s292 = smul.addr %s291, 8
        %s293 = scalar_lea.vmem %s3, %s292
        %p294 = pneg %p134
        %p295 = pneg %p131
        %p296 = scmp.lt.s32.totalorder %s31, 1
        %s297 = scalar_select %p296, %s31, 1
        %p298 = scmp.lt.s32.totalorder %s33, 0
        %s299 = scalar_select %p298, %s33, 0
        %s300 = sadd.s32 %s299, %s297
        %s301 = scalar_lea.vmem %s4, %s300
        %p302 = pneg %p162
        %p303 = pneg %p159
        %p304 = pneg %p192
        %p305 = pneg %p189
        %s306 = sand.u32 %s179, 1
        %s307 = scalar_lea.sflag [#allocation6], %s306
        %s308 = sand.u32 %s179, 1
        %s309 = smul.addr %s308, 8
        %s310 = scalar_lea.vmem [#allocation5], %s309
        %p311 = scmp.lt.s32.totalorder %s31, 1
        %s312 = scalar_select %p311, %s31, 1
        %p313 = scmp.lt.s32.totalorder %s32, 0
        %s314 = scalar_select %p313, %s32, 0
        %p315 = scmp.lt.s32.totalorder %s34, 0
        %s316 = scalar_select %p315, %s34, 0
        %s317 = sadd.s32 %s316, %s314
        %s318 = sadd.s32 %s317, %s312
        %s319 = smul.addr %s318, 2
        %s320 = scalar_lea.vmem %s1, %s319
        %p321 = scmp.lt.s32.totalorder %s31, 1
        %s322 = scalar_select %p321, %s31, 1
        %p323 = scmp.lt.s32.totalorder %s34, 0
        %s324 = scalar_select %p323, %s34, 0
        %p325 = scmp.lt.s32.totalorder %s33, 0
        %s326 = scalar_select %p325, %s33, 0
        %s327 = sadd.s32 %s326, %s324
        %s328 = sadd.s32 %s327, %s322
        %s329 = smul.addr %s328, 8
        %s330 = scalar_lea.vmem %s2, %s329
        %p331 = scmp.lt.s32.totalorder %s31, 1
        %s332 = scalar_select %p331, %s31, 1
        %p333 = scmp.lt.s32.totalorder %s32, 0
        %s334 = scalar_select %p333, %s32, 0
        %s335 = sadd.s32 %s334, %s332
        %s336 = smul.addr %s335, 8
        %s337 = scalar_lea.vmem %s3, %s336
        %p338 = scmp.lt.s32.totalorder %s31, 1
        %s339 = scalar_select %p338, %s31, 1
        %p340 = scmp.lt.s32.totalorder %s33, 0
        %s341 = scalar_select %p340, %s33, 0
        %s342 = sadd.s32 %s341, %s339
        %s343 = scalar_lea.vmem %s4, %s342
        %p345 = scmp.eq.s32.totalorder %s34, 0
        // Predicated region
        $region37: #{tpu_custom_call.1} parent=35 // pred_check
          %p346 = pneg %p345
        $region38: #{tpu_custom_call.1} parent=35 // pred_check_branch
          %348 = sbr.rel (%p346) target = $region40
        $region39: #{tpu_custom_call.1} parent=35 // pred_region
          %vm349 = vcmask 130048
          %350 = vst.msk [vmem:[#allocation2] sm:$0xff] %vm349, 0.0
        $region40: #{tpu_custom_call.1} parent=35 // pred_fallthru
          _
        %v351 = vld [vmem:[#allocation2] sm:$0xff]
        %v352 = vld [vmem:[%s320] sm:$0x3]
        %v353 = vunpack.c.l.s8.bf16 %v352
        %v354 = vld [vmem:[%s330] sm:$0xff]
        %v355 = vunpack.c.l.s8.bf16 %v354
        %v356 = vunpack.c.h.s8.bf16 %v354
        %vm357 = vcmask 261120
        %v359 = vsel %vm357, %v353, 0
        %361 = vmatprep.subr.bf16.mxu0 0
        %362 = vmatpush1.bf16.msra.mxu0 %v355
        %363 = vmatprep.subr.bf16.mxu0 0
        %364 = vmatpush1.bf16.msra.mxu0 %v356
        %365 = vmatprep.subr.bf16.mxu0 0
        %366 = vmatpush1.bf16.msra.mxu0 0
        %367 = vmatprep.subr.bf16.mxu0 0
        %368 = vmatpush1.bf16.msra.mxu0 0
        %369 = vmatprep.subr.bf16.mxu0 0
        %370 = vmatpush1.bf16.msra.mxu0 0
        %371 = vmatprep.subr.bf16.mxu0 0
        %372 = vmatpush1.bf16.msra.mxu0 0
        %373 = vmatprep.subr.bf16.mxu0 0
        %374 = vmatpush1.bf16.msra.mxu0 0
        %375 = vmatprep.subr.bf16.mxu0 0
        %376 = vmatpush1.bf16.msra.mxu0 0
        %377 = vmatprep.subr.bf16.mxu0 0
        %378 = vmatpush1.bf16.msra.mxu0 0
        %379 = vmatprep.subr.bf16.mxu0 0
        %380 = vmatpush1.bf16.msra.mxu0 0
        %381 = vmatprep.subr.bf16.mxu0 0
        %382 = vmatpush1.bf16.msra.mxu0 0
        %383 = vmatprep.subr.bf16.mxu0 0
        %384 = vmatpush1.bf16.msra.mxu0 0
        %385 = vmatprep.subr.bf16.mxu0 0
        %386 = vmatpush1.bf16.msra.mxu0 0
        %387 = vmatprep.subr.bf16.mxu0 0
        %388 = vmatpush1.bf16.msra.mxu0 0
        %389 = vmatprep.subr.bf16.mxu0 0
        %390 = vmatpush1.bf16.msra.mxu0 0
        %391 = vmatprep.subr.bf16.mxu0 0
        %392 = vmatpush1.bf16.msra.mxu0 0
        %393 = vmatprep.mubr.bf16.mxu0 0
        %394 = vmatmul.mubr.bf16.gmra.mrb[0].mxu0 %v359
        %v395 = vpop.f32.mrb[0].mxu0
        %v396 = vadd.f32 0.0, %v395
        %v397 = vpop.f32.mrb[0].mxu0
        %v398 = vpop.f32.mrb[0].mxu0
        %v399 = vpop.f32.mrb[0].mxu0
        %400 = vdwg.mxu0
        %v401 = vadd.f32 %v351, %v396
        %vm402 = vcmask 130048
        %403 = vst.msk [vmem:[#allocation2] sm:$0xff] %vm402, %v401
        // Predicated region
        $region41: #{tpu_custom_call.1} parent=35 // pred_check
          %p404 = pneg %p345
        $region42: #{tpu_custom_call.1} parent=35 // pred_check_branch
          %406 = sbr.rel (%p404) target = $region44
        $region43: #{tpu_custom_call.1} parent=35 // pred_region
          %s407 = sld [smem:[#allocation4]]
          %s408 = sld [smem:[#allocation4 + $0x1]]
          %s409 = sld [smem:[#allocation4 + $0x2]]
          %v410 = vld [vmem:[#allocation2] sm:$0xff]
          %v411 = vld [vmem:[%s343] sm:$0x1]
          %v412 = vstv %s407
          %v413 = vmul.f32 %v412, %v411
          %v415 = vlaneseq
          %v416 = vshrl.u32 %v415, 7
          %v417 = vsub.s32 0, %v416
          %v418 = vrot.slane %v413, %v417
          %v420 = vsub.f32 %v410, %v418
          %v421 = vld [vmem:[%s337] sm:$0xff]
          %v422 = vstv %s408
          %v423 = vmul.f32 %v422, %v421
          %425 = vset.pattern.permute.xlu0 0
          %426 = vperm.xlu0 %425, %v423
          %v427 = vpop.permute.xlu0 %426
          %v429 = vsub.f32 %v420, %v427
          %s430 = smul.f32 %s407, 32.0
          %s431 = smul.f32 %s430, %s408
          %v432 = vstv %s431
          %v433 = vadd.f32 %v429, %v432
          %v434 = vstv %s409
          %v435 = vmul.f32 %v433, %v434
          %436 = vst.msk [vmem:[%s310] sm:$0xff] %vm402, %v435
        $region44: #{tpu_custom_call.1} parent=35 // pred_fallthru
          _
        %s437 = sand.u32 %s179, 1
        %s438 = scalar_lea.sflag [#allocation6], %s437
        %s439 = sand.u32 %s179, 1
        %s440 = smul.addr %s439, 8
        %s441 = scalar_lea.vmem [#allocation5], %s440
        // Predicated region
        $region45: #{tpu_custom_call.1} parent=35 // pred_check
          %p442 = pneg %p189
        $region46: #{tpu_custom_call.1} parent=35 // pred_check_branch
          %444 = sbr.rel (%p442) target = $region48
        $region47: #{tpu_custom_call.1} parent=35 // pred_region
          %s446 = ssub.s32 128, 128
          %447 = vsyncadd %s438, %s446
          %s448 = sadd.s32 %s33, %s32
          %s449 = sadd.s32 %s448, %s31
          %s450 = smul.addr %s449, 128
          %s451 = scalar_lea.hbm %s5, %s450
          %s453 = sshll.u32 %s441, 4
          %s454 = int_to_ptr.vmem [resolvable:$true] %s453
          %456 = dma.vmem_to_hbm [thread:$0]  %s454, 128, %s451, %s438
        $region48: #{tpu_custom_call.1} parent=35 // pred_fallthru
          _
      $region36: #{tpu_custom_call.1} parent=5 // pred_fallthru
        _
      %p457 = scmp.le.s32.totalorder 2, %s20
      // Predicated region
      $region49: #{tpu_custom_call.1} parent=5 // pred_check
        %p458 = pneg %p457
      $region50: #{tpu_custom_call.1} parent=5 // pred_check_branch
        %460 = sbr.rel (%p458) target = $region52
      $region51: #{tpu_custom_call.1} parent=5 // pred_region
        %s461 = ssub.s32 %s20, 2
        // Predicated region
        $region53: #{tpu_custom_call.1} parent=51 // pred_check
          %p462 = pneg %p195
        $region54: #{tpu_custom_call.1} parent=51 // pred_check_branch
          %464 = sbr.rel (%p462) target = $region56
        $region55: #{tpu_custom_call.1} parent=51 // pred_region
          %s465 = sand.u32 %s180, 1
          %s466 = scalar_lea.sflag [#allocation6], %s465
          %s467 = sand.u32 %s180, 1
          %s468 = smul.addr %s467, 8
          %s469 = scalar_lea.vmem [#allocation5], %s468
          %470 = dma.done %s466, 128
        $region56: #{tpu_custom_call.1} parent=51 // pred_fallthru
          _
      $region52: #{tpu_custom_call.1} parent=5 // pred_fallthru
        _
    $region6: #{tpu_custom_call.1} parent=1 // loop_footer
      %s24 = sadd.s32 1, %s20
    $region7: #{tpu_custom_call.1} parent=1 // loop_footer_branch
      %19 = sbr.rel target = $region3
    $region8: #{tpu_custom_call.1} parent=1 // loop_exit
      _
    %471 = vsyncpa [#allocation6], 1
    %s472 = scalar_lea.sflag [#allocation6], 1
    %473 = vsyncpa %s472, 1

</llo_original>
